<compile_context>
chip_gen: v6e
topology: v6e:2x2x1
jax: 0.10.0
libtpu: 0.0.40
codegen_flags: <defaults>
</compile_context>

<pallas_src>
import functools

import jax
import jax.numpy as jnp
from jax.experimental import pallas as pl
from jax.experimental.pallas import tpu as pltpu

LANES = 128
SUBLANES = 8
MAX_BLOCK_ROWS = 8192        # (8192, 128) f32 tile = 4 MiB per pipeline buffer
MIN_STEPS_PER_SLICE = 2      # keep double-buffering overlap on small inputs
VMEM_LIMIT_BYTES = 48 * 1024 * 1024   # > 16 MiB footprint, < 64 MiB v7x physical


def _default_num_slices():
    """TensorCores to split the reduction across: 2 on v7x-class chips, 1 on
    single-TC v5e/v6e.  Defensive: any detection failure falls back to 1."""
    kind = ""
    try:
        kind = jax.devices()[0].device_kind.lower()
    except Exception:
        pass
    if ("v5" in kind) or ("v6" in kind):
        return 1
    try:
        info = pltpu.get_tpu_info()
        for name in ("num_tensorcores", "tensorcores_per_chip",
                     "tensor_cores_per_chip", "num_cores", "cores_per_chip"):
            v = getattr(info, name, None)
            if isinstance(v, int) and v >= 1:
                return max(1, min(2, int(v)))
    except Exception:
        pass
    return 2 if "v7" in kind else 1


def _dice_partial_kernel(pred_ref, true_ref, out_ref, *,
                         block_rows, blocks_per_slice, num_blocks, total_rows,
                         needs_tail_mask, has_overreach):
    c = pl.program_id(0)   # parallel slice (TensorCore) index
    i = pl.program_id(1)   # block index within the slice (reduction axis)
    logical_block = c * blocks_per_slice + i

    # Output block index is invariant in i -> VMEM-resident accumulator.
    @pl.when(i == 0)
    def _init():
        out_ref[...] = jnp.zeros_like(out_ref)

    def _accumulate(apply_mask):
        p = pred_ref[...].astype(jnp.float32)
        t = true_ref[...].astype(jnp.float32)
        if apply_mask:
            # Only the ragged final block pays iota + compare + 2x select.
            row_ids = (logical_block * block_rows
                       + jax.lax.broadcasted_iota(jnp.int32,
                                                  (block_rows, LANES), 0))
            valid = row_ids < total_rows
            p = jnp.where(valid, p, 0.0)
            t = jnp.where(valid, t, 0.0)
        # Vector-only accumulation (VPU): reduce over the vreg-aligned
        # leading axis; the reshape is (8,128)-tile aligned (no VMEM copy).
        pt = (p * t).reshape(-1, SUBLANES, LANES).sum(axis=0)
        st = (p + t).reshape(-1, SUBLANES, LANES).sum(axis=0)   # sum(p)+sum(t)
        out_ref[0] += pt
        out_ref[1] += st

    if needs_tail_mask:
        last = num_blocks - 1

        @pl.when(logical_block < last)
        def _fast():
            _accumulate(False)

        @pl.when(logical_block == last)
        def _masked():
            _accumulate(True)
        # logical_block > last (overreached clamped duplicates) do nothing.
    elif has_overreach:
        @pl.when(logical_block < num_blocks)
        def _fast():
            _accumulate(False)
    else:
        _accumulate(False)


def dice_loss(inputs, targets, smooth=1.0, *, num_slices=None,
              max_block_rows=MAX_BLOCK_ROWS):
    """Dice loss matching the PyTorch DiceLoss.forward semantics.

    inputs, targets: arrays of identical shape (NCHW). Returns scalar f32 loss.
    """
    assert inputs.shape == targets.shape
    pred = inputs.reshape(-1)
    true = targets.reshape(-1)

    n = pred.shape[0]
    sub_tile = SUBLANES * LANES
    n_pad = pl.cdiv(n, sub_tile) * sub_tile
    if n_pad != n:
        # Explicit zero padding (at most sub_tile - 1 elems): changes no sum.
        pred = jnp.pad(pred, (0, n_pad - n))
        true = jnp.pad(true, (0, n_pad - n))

    rows = n_pad // LANES                     # multiple of 8 by construction
    pred2d = pred.reshape(rows, LANES)
    true2d = true.reshape(rows, LANES)

    if num_slices is None:
        num_slices = _default_num_slices()
    num_slices = max(1, int(num_slices))

    # Tile sizing: as large as allowed (fewer ~0.35us grid steps), but keep
    # >= MIN_STEPS_PER_SLICE real blocks per slice so pipelining survives.
    max_block_rows = max(SUBLANES, (int(max_block_rows) // SUBLANES) * SUBLANES)
    target = pl.cdiv(rows, num_slices * MIN_STEPS_PER_SLICE)
    target = pl.cdiv(target, SUBLANES) * SUBLANES
    block_rows = max(SUBLANES, min(max_block_rows, target, rows))

    num_blocks = pl.cdiv(rows, block_rows)
    num_slices = min(num_slices, num_blocks)
    blocks_per_slice = pl.cdiv(num_blocks, num_slices)

    needs_tail_mask = (rows % block_rows) != 0            # static Python bool
    has_overreach = (blocks_per_slice * num_slices) != num_blocks

    def in_map(c, i):
        # Clamp overreached logical blocks; their compute is skipped in-kernel.
        return (jnp.minimum(c * blocks_per_slice + i, num_blocks - 1), 0)

    kernel = functools.partial(
        _dice_partial_kernel,
        block_rows=block_rows,
        blocks_per_slice=blocks_per_slice,
        num_blocks=num_blocks,
        total_rows=rows,
        needs_tail_mask=needs_tail_mask,
        has_overreach=has_overreach,
    )

    partials = pl.pallas_call(
        kernel,
        out_shape=jax.ShapeDtypeStruct((num_slices * 2, SUBLANES, LANES),
                                       jnp.float32),
        grid_spec=pltpu.PrefetchScalarGridSpec(
            num_scalar_prefetch=0,
            grid=(num_slices, blocks_per_slice),
            in_specs=[
                pl.BlockSpec((block_rows, LANES), in_map),
                pl.BlockSpec((block_rows, LANES), in_map),
            ],
            out_specs=pl.BlockSpec((2, SUBLANES, LANES),
                                   lambda c, i: (c, 0, 0)),
        ),
        compiler_params=pltpu.CompilerParams(
            dimension_semantics=("parallel", "arbitrary"),
            vmem_limit_bytes=VMEM_LIMIT_BYTES,
        ),
    )(pred2d, true2d)

    partials = partials.reshape(num_slices, 2, SUBLANES, LANES)
    smooth = jnp.float32(smooth)
    inter = jnp.sum(partials[:, 0])
    denom = jnp.sum(partials[:, 1])        # sum(pred) + sum(true)
    return (1.0 - (2.0 * inter + smooth) / (denom + smooth)).astype(jnp.float32)


def _ref_loss(p, t, smooth=1.0):
    p = p.reshape(-1).astype(jnp.float32)
    t = t.reshape(-1).astype(jnp.float32)
    return 1.0 - (2.0 * jnp.sum(p * t) + smooth) / (jnp.sum(p) + jnp.sum(t) + smooth)


if __name__ == "__main__":
    key = jax.random.PRNGKey(0)
    k1, k2, k3, k4, k5, k6 = jax.random.split(key, 6)

    # Main example: small NCHW, probability-like preds and binary targets.
    B, C, H, W = 2, 4, 16, 16
    inputs = jax.nn.sigmoid(jax.random.normal(k1, (B, C, H, W), jnp.float32))
    targets = (jax.random.uniform(k2, (B, C, H, W)) > 0.5).astype(jnp.float32)
    loss = dice_loss(inputs, targets, smooth=1.0)
    jax.block_until_ready(loss)
    ref = _ref_loss(inputs, targets)
    assert jnp.allclose(loss, ref, atol=1e-5, rtol=1e-5), (loss, ref)

    # Ragged element count: exercises the wrapper sub-tile zero-pad path.
    x2 = jax.nn.sigmoid(jax.random.normal(k3, (2, 3, 7, 5), jnp.float32))
    y2 = (jax.random.uniform(k4, (2, 3, 7, 5)) > 0.5).astype(jnp.float32)
    l2 = dice_loss(x2, y2)
    jax.block_until_ready(l2)
    assert jnp.allclose(l2, _ref_loss(x2, y2), atol=1e-5, rtol=1e-5), (
        l2, _ref_loss(x2, y2))

    # Multi-block case with the default (auto) slice count and tiling.
    x3 = jax.nn.sigmoid(jax.random.normal(k5, (4, 8, 130, 160), jnp.float32))
    y3 = (jax.random.uniform(k6, (4, 8, 130, 160)) > 0.5).astype(jnp.float32)
    l3 = dice_loss(x3, y3)
    jax.block_until_ready(l3)
    assert jnp.allclose(l3, _ref_loss(x3, y3), atol=1e-4, rtol=1e-4), (
        l3, _ref_loss(x3, y3))

    # Forced 2-slice + small tiles: exercises the gated ragged-tail mask
    # (l4a) and the overreached clamped, compute-skipped grid step (l4b).
    k7, k8 = jax.random.split(k5)
    x4 = jax.nn.sigmoid(jax.random.normal(k7, (1, 3, 77, 129), jnp.float32))
    y4 = (jax.random.uniform(k8, (1, 3, 77, 129)) > 0.5).astype(jnp.float32)
    l4a = dice_loss(x4, y4, num_slices=2, max_block_rows=64)
    l4b = dice_loss(x4, y4, num_slices=2, max_block_rows=48)
    jax.block_until_ready((l4a, l4b))
    r4 = _ref_loss(x4, y4)
    assert jnp.allclose(l4a, r4, atol=1e-5, rtol=1e-5), (l4a, r4)
    assert jnp.allclose(l4b, r4, atol=1e-5, rtol=1e-5), (l4b, r4)

    print("KERNEL_OK")
</pallas_src>

<mosaic_0001>
module attributes {stable_mosaic.version = 11 : i64} {
  func.func @_dice_partial_kernel(%arg0: i32, %arg1: i32, %arg2: memref<8x128xf32, #tpu.memory_space<vmem>>, %arg3: memref<8x128xf32, #tpu.memory_space<vmem>>, %arg4: memref<2x8x128xf32, #tpu.memory_space<vmem>>) attributes {dimension_semantics = [#tpu.dimension_semantics<parallel>, #tpu.dimension_semantics<arbitrary>], iteration_bounds = array<i64: 1, 2>, scalar_prefetch = 0 : i64, scratch_operands = 0 : i64, tpu.core_type = #tpu.core_type<tc>, window_params = [{transform_indices = @transform_0, window_bounds = array<i64: 8, 128>}, {transform_indices = @transform_1, window_bounds = array<i64: 8, 128>}, {transform_indices = @transform_2, window_bounds = array<i64: 2, 8, 128>}]} {
    %c0_i32 = arith.constant 0 : i32
    %0 = arith.cmpi eq, %arg1, %c0_i32 : i32
    %1 = arith.extui %0 : i1 to i32
    %c0_i32_0 = arith.constant 0 : i32
    %2 = arith.cmpi ne, %1, %c0_i32_0 : i32
    scf.if %2 {
      %cst_16 = arith.constant 0.000000e+00 : f32
      %23 = vector.broadcast %cst_16 : f32 to vector<2x8x128xf32>
      %c0_17 = arith.constant 0 : index
      %c0_18 = arith.constant 0 : index
      %c0_19 = arith.constant 0 : index
      %24 = vector.load %arg4[%c0_17, %c0_18, %c0_19] : memref<2x8x128xf32, #tpu.memory_space<vmem>>, vector<2x8x128xf32>
      tpu.vector_store %arg4[%c0_17, %c0_18, %c0_19], %23 {strides = array<i32>} : memref<2x8x128xf32, #tpu.memory_space<vmem>>, vector<2x8x128xf32>,
    } else {
    }
    %c0 = arith.constant 0 : index
    %c0_1 = arith.constant 0 : index
    %3 = vector.load %arg2[%c0, %c0_1] : memref<8x128xf32, #tpu.memory_space<vmem>>, vector<8x128xf32>
    %c0_2 = arith.constant 0 : index
    %c0_3 = arith.constant 0 : index
    %4 = vector.load %arg3[%c0_2, %c0_3] : memref<8x128xf32, #tpu.memory_space<vmem>>, vector<8x128xf32>
    %5 = arith.mulf %3, %4 : vector<8x128xf32>
    %6 = vector.shape_cast %5 : vector<8x128xf32> to vector<1x8x128xf32>
    %cst = arith.constant dense<0.000000e+00> : vector<8x128xf32>
    %7 = vector.multi_reduction <add>, %6, %cst [0] : vector<1x8x128xf32> to vector<8x128xf32>
    %8 = arith.addf %3, %4 : vector<8x128xf32>
    %9 = vector.shape_cast %8 : vector<8x128xf32> to vector<1x8x128xf32>
    %cst_4 = arith.constant dense<0.000000e+00> : vector<8x128xf32>
    %10 = vector.multi_reduction <add>, %9, %cst_4 [0] : vector<1x8x128xf32> to vector<8x128xf32>
    %c0_5 = arith.constant 0 : index
    %c0_6 = arith.constant 0 : index
    %c0_7 = arith.constant 0 : index
    %11 = vector.load %arg4[%c0_5, %c0_6, %c0_7] : memref<2x8x128xf32, #tpu.memory_space<vmem>>, vector<1x8x128xf32>
    %12 = vector.shape_cast %11 : vector<1x8x128xf32> to vector<8x128xf32>
    %13 = arith.addf %12, %7 : vector<8x128xf32>
    %c0_8 = arith.constant 0 : index
    %c0_9 = arith.constant 0 : index
    %c0_10 = arith.constant 0 : index
    %14 = vector.load %arg4[%c0_8, %c0_9, %c0_10] : memref<2x8x128xf32, #tpu.memory_space<vmem>>, vector<1x8x128xf32>
    %15 = vector.shape_cast %14 : vector<1x8x128xf32> to vector<8x128xf32>
    %16 = vector.shape_cast %13 : vector<8x128xf32> to vector<1x8x128xf32>
    tpu.vector_store %arg4[%c0_8, %c0_9, %c0_10], %16 {strides = array<i32>} : memref<2x8x128xf32, #tpu.memory_space<vmem>>, vector<1x8x128xf32>,
    %c1 = arith.constant 1 : index
    %c0_11 = arith.constant 0 : index
    %c0_12 = arith.constant 0 : index
    %17 = vector.load %arg4[%c1, %c0_11, %c0_12] : memref<2x8x128xf32, #tpu.memory_space<vmem>>, vector<1x8x128xf32>
    %18 = vector.shape_cast %17 : vector<1x8x128xf32> to vector<8x128xf32>
    %19 = arith.addf %18, %10 : vector<8x128xf32>
    %c1_13 = arith.constant 1 : index
    %c0_14 = arith.constant 0 : index
    %c0_15 = arith.constant 0 : index
    %20 = vector.load %arg4[%c1_13, %c0_14, %c0_15] : memref<2x8x128xf32, #tpu.memory_space<vmem>>, vector<1x8x128xf32>
    %21 = vector.shape_cast %20 : vector<1x8x128xf32> to vector<8x128xf32>
    %22 = vector.shape_cast %19 : vector<8x128xf32> to vector<1x8x128xf32>
    tpu.vector_store %arg4[%c1_13, %c0_14, %c0_15], %22 {strides = array<i32>} : memref<2x8x128xf32, #tpu.memory_space<vmem>>, vector<1x8x128xf32>,
    return
  }
  func.func @transform_0(%arg0: i32, %arg1: i32) -> (i32, i32) {
    %c2_i32 = arith.constant 2 : i32
    %0 = arith.muli %arg0, %c2_i32 : i32
    %1 = arith.addi %0, %arg1 : i32
    %c1_i32 = arith.constant 1 : i32
    %2 = arith.minsi %1, %c1_i32 : i32
    %c0_i32 = arith.constant 0 : i32
    %c0_i32_0 = arith.constant 0 : i32
    return %2, %c0_i32 : i32, i32
  }
  func.func @transform_1(%arg0: i32, %arg1: i32) -> (i32, i32) {
    %c2_i32 = arith.constant 2 : i32
    %0 = arith.muli %arg0, %c2_i32 : i32
    %1 = arith.addi %0, %arg1 : i32
    %c1_i32 = arith.constant 1 : i32
    %2 = arith.minsi %1, %c1_i32 : i32
    %c0_i32 = arith.constant 0 : i32
    %c0_i32_0 = arith.constant 0 : i32
    return %2, %c0_i32 : i32, i32
  }
  func.func @transform_2(%arg0: i32, %arg1: i32) -> (i32, i32, i32) {
    %c0_i32 = arith.constant 0 : i32
    %c0_i32_0 = arith.constant 0 : i32
    %c0_i32_1 = arith.constant 0 : i32
    return %arg0, %c0_i32, %c0_i32_0 : i32, i32, i32
  }
}

</mosaic_0001>

<llo_original>
// kernel: tpu_custom_call.1
$region0: #{tpu_custom_call.1}
  #allocation0 [shape = 'u32[]', space=smem, size = 0x4, offset = 0x4, fixed_abs, tag = 'smem constant byte address 0x4 - core index']
  #allocation1 [shape = 'u32[144,128]{1,0:T(1,128)}', space=vmem, size = 0x12000, scoped, tag = 'internal scratch']
  %s0 = inlined_call_operand.hbm [shape: f32[16,128], index: 0, kind: input, shape index: {}]
  %s1 = inlined_call_operand.hbm [shape: f32[16,128], index: 1, kind: input, shape index: {}]
  %s2 = inlined_call_operand.hbm [shape: f32[2,8,128], index: 2, kind: output, shape index: {}]
  %s3 = sld [smem:[#allocation0]]
  $region53: #{tpu_custom_call.1} parent=0
    _
  %s5 = ssub.s32 1, %s3
  %s6 = scalar_select 0, %s5, %s3
  $region1: #{tpu_custom_call.1} parent=0
    #allocation2 [shape = 'u8[8192]{0}', space=vmem, size = 0x2000, scoped, tag = 'input window, operand 0']
    #allocation3 [shape = 's32[2]{0}', space=sflag, size = 0x8, scoped, tag = 'scoped memory for tpu_custom_call.1']
    #allocation4 [shape = 's32[2]{0}', space=sflag, size = 0x8, scoped, tag = 'scoped memory for tpu_custom_call.1']
    #allocation5 [shape = 'u8[8192]{0}', space=vmem, size = 0x2000, scoped, tag = 'input window, operand 1']
    #allocation6 [shape = 's32[2]{0}', space=sflag, size = 0x8, scoped, tag = 'scoped memory for tpu_custom_call.1']
    #allocation7 [shape = 'u8[8192]{0}', space=vmem, size = 0x2000, scoped, tag = 'output window, operand 0, single buffered']
    %7 = vsyncpa [#allocation3], 0
    %s8 = scalar_lea.sflag [#allocation3], 1
    %9 = vsyncpa %s8, 0
    %10 = vsyncpa [#allocation6], 0
    %s11 = scalar_lea.sflag [#allocation6], 1
    %12 = vsyncpa %s11, 0
    %13 = vsyncpa [#allocation4], 0
    loop: start=0, step=1, limit=4
    $region2: #{tpu_custom_call.1} parent=1 // loop_pre_header
      _
    $region3: #{tpu_custom_call.1} parent=1 // loop_header
      %s15 = sphi 0, %s19
      %p16 = scmp.ge.s32.totalorder %s15, 4
      %s22 = sphi 0, %s34
      %s23 = sphi 0, %s30
      %s24 = sphi 0, %s22
      %s25 = sphi 0, %s23
      %s26 = sphi 0, %s24
      %s27 = sphi 0, %s25
      %s45 = sphi 0, %s47
      %s48 = sphi 0, %s45
      %s49 = sphi 0, %s48
      %s65 = sphi 0, %s49
      %s79 = sphi 0, %s81
      %s82 = sphi 0, %s79
      %s83 = sphi 0, %s82
      %s99 = sphi 0, %s83
      %s105 = sphi 0, %s107
      %s108 = sphi 0, %s105
      %s109 = sphi 0, %s108
      %s125 = sphi 0, %s109
    $region4: #{tpu_custom_call.1} parent=1 // loop_header_branch
      %18 = sbr.rel (%p16) target = $region8
    $region5: #{tpu_custom_call.1} parent=1 // loop_body
      %s20 = ssub.s32 %s15, 1
      %s21 = ssub.s32 %s15, 2
      %s28 = sadd.s32 1, %s23
      %p29 = scmp.ge.s32.totalorder %s28, 2
      %s30 = scalar_select %p29, 0, %s28
      %s31 = sadd.s32 1, %s22
      %s32 = scalar_select %p29, %s31, %s22
      %p33 = scmp.ge.s32.totalorder %s32, 1
      %s34 = scalar_select %p33, 0, %s32
      %s35 = smul.u32 %s22, 2
      %s36 = sadd.s32 %s35, %s23
      %p37 = scmp.lt.s32.totalorder %s36, 1
      %s38 = scalar_select %p37, %s36, 1
      %s39 = smul.u32 %s34, 2
      %s40 = sadd.s32 %s39, %s30
      %p41 = scmp.lt.s32.totalorder %s40, 1
      %s42 = scalar_select %p41, %s40, 1
      %s43 = ssub.s32 %s38, %s42
      %p44 = scmp.eq.s32.totalorder %s43, 0
      %s46 = sadd.s32 %s45, 1
      %s47 = scalar_select %p44, %s45, %s46
      %p50 = pneg %p44
      %p51 = scmp.eq.s32.totalorder %s15, 1
      %p52 = por %p50, %p51
      %p53 = scmp.ne.s32.totalorder %s45, %s48
      %p54 = scmp.eq.s32.totalorder %s15, 0
      %p55 = por %p53, %p54
      %p56 = scmp.ne.s32.totalorder %s45, %s48
      %p57 = scmp.eq.s32.totalorder %s20, 1
      %p58 = por %p56, %p57
      %p59 = scmp.ne.s32.totalorder %s48, %s49
      %p60 = scmp.eq.s32.totalorder %s20, 0
      %p61 = por %p59, %p60
      %p62 = scmp.ne.s32.totalorder %s48, %s49
      %p63 = scmp.eq.s32.totalorder %s21, 1
      %p64 = por %p62, %p63
      %p66 = scmp.ne.s32.totalorder %s49, %s65
      %p67 = scmp.eq.s32.totalorder %s21, 0
      %p68 = por %p66, %p67
      %s69 = smul.u32 %s22, 2
      %s70 = sadd.s32 %s69, %s23
      %p71 = scmp.lt.s32.totalorder %s70, 1
      %s72 = scalar_select %p71, %s70, 1
      %s73 = smul.u32 %s34, 2
      %s74 = sadd.s32 %s73, %s30
      %p75 = scmp.lt.s32.totalorder %s74, 1
      %s76 = scalar_select %p75, %s74, 1
      %s77 = ssub.s32 %s72, %s76
      %p78 = scmp.eq.s32.totalorder %s77, 0
      %s80 = sadd.s32 %s79, 1
      %s81 = scalar_select %p78, %s79, %s80
      %p84 = pneg %p78
      %p85 = scmp.eq.s32.totalorder %s15, 1
      %p86 = por %p84, %p85
      %p87 = scmp.ne.s32.totalorder %s79, %s82
      %p88 = scmp.eq.s32.totalorder %s15, 0
      %p89 = por %p87, %p88
      %p90 = scmp.ne.s32.totalorder %s79, %s82
      %p91 = scmp.eq.s32.totalorder %s20, 1
      %p92 = por %p90, %p91
      %p93 = scmp.ne.s32.totalorder %s82, %s83
      %p94 = scmp.eq.s32.totalorder %s20, 0
      %p95 = por %p93, %p94
      %p96 = scmp.ne.s32.totalorder %s82, %s83
      %p97 = scmp.eq.s32.totalorder %s21, 1
      %p98 = por %p96, %p97
      %p100 = scmp.ne.s32.totalorder %s83, %s99
      %p101 = scmp.eq.s32.totalorder %s21, 0
      %p102 = por %p100, %p101
      %s103 = ssub.s32 %s22, %s34
      %p104 = scmp.eq.s32.totalorder %s103, 0
      %s106 = sadd.s32 %s105, 1
      %s107 = scalar_select %p104, %s105, %s106
      %p110 = pneg %p104
      %p111 = scmp.eq.s32.totalorder %s15, 1
      %p112 = por %p110, %p111
      %p113 = scmp.ne.s32.totalorder %s105, %s108
      %p114 = scmp.eq.s32.totalorder %s15, 0
      %p115 = por %p113, %p114
      %p116 = scmp.ne.s32.totalorder %s105, %s108
      %p117 = scmp.eq.s32.totalorder %s20, 1
      %p118 = por %p116, %p117
      %p119 = scmp.ne.s32.totalorder %s108, %s109
      %p120 = scmp.eq.s32.totalorder %s20, 0
      %p121 = por %p119, %p120
      %p122 = scmp.ne.s32.totalorder %s108, %s109
      %p123 = scmp.eq.s32.totalorder %s21, 1
      %p124 = por %p122, %p123
      %p126 = scmp.ne.s32.totalorder %s109, %s125
      %p127 = scmp.eq.s32.totalorder %s21, 0
      %p128 = por %p126, %p127
      %p129 = scmp.le.s32.totalorder 1, %s15
      %p130 = scmp.lt.s32.totalorder %s15, 3
      %p131 = pnand %p129, %p130
      %p132 = pneg %p131
      // Predicated region
      $region9: #{tpu_custom_call.1} parent=5 // pred_check
        _
      $region10: #{tpu_custom_call.1} parent=5 // pred_check_branch
        %134 = sbr.rel (%p131) target = $region12
      $region11: #{tpu_custom_call.1} parent=5 // pred_region
        %s135 = ssub.s32 %s15, 1
      $region12: #{tpu_custom_call.1} parent=5 // pred_fallthru
        _
      %p136 = scmp.lt.s32.totalorder %s15, 2
      // Predicated region
      $region13: #{tpu_custom_call.1} parent=5 // pred_check
        %p137 = pneg %p136
      $region14: #{tpu_custom_call.1} parent=5 // pred_check_branch
        %139 = sbr.rel (%p137) target = $region16
      $region15: #{tpu_custom_call.1} parent=5 // pred_region
        // Predicated region
        $region17: #{tpu_custom_call.1} parent=15 // pred_check
          %p140 = pneg %p55
        $region18: #{tpu_custom_call.1} parent=15 // pred_check_branch
          %142 = sbr.rel (%p140) target = $region20
        $region19: #{tpu_custom_call.1} parent=15 // pred_region
          %s143 = sand.u32 %s45, 1
          %s144 = scalar_lea.sflag [#allocation3], %s143
          %s145 = sand.u32 %s45, 1
          %s146 = smul.addr %s145, 8
          %s147 = scalar_lea.vmem [#allocation2], %s146
          %s148 = smul.u32 %s22, 2
          %s149 = sadd.s32 %s148, %s23
          %p150 = scmp.lt.s32.totalorder %s149, 1
          %s151 = scalar_select %p150, %s149, 1
          %s153 = ssub.s32 128, 128
          %154 = vsyncadd %s144, %s153
          %s155 = smul.addr %s151, 128
          %s156 = scalar_lea.hbm %s0, %s155
          %s158 = sshll.u32 %s147, 4
          %s159 = int_to_ptr.vmem [resolvable:$true] %s158
          %161 = dma.hbm_to_vmem [thread:$0]  %s156, 128, %s159, %s144
        $region20: #{tpu_custom_call.1} parent=15 // pred_fallthru
          _
        // Predicated region
        $region21: #{tpu_custom_call.1} parent=15 // pred_check
          %p162 = pneg %p89
        $region22: #{tpu_custom_call.1} parent=15 // pred_check_branch
          %164 = sbr.rel (%p162) target = $region24
        $region23: #{tpu_custom_call.1} parent=15 // pred_region
          %s165 = sand.u32 %s79, 1
          %s166 = scalar_lea.sflag [#allocation6], %s165
          %s167 = sand.u32 %s79, 1
          %s168 = smul.addr %s167, 8
          %s169 = scalar_lea.vmem [#allocation5], %s168
          %s170 = smul.u32 %s22, 2
          %s171 = sadd.s32 %s170, %s23
          %p172 = scmp.lt.s32.totalorder %s171, 1
          %s173 = scalar_select %p172, %s171, 1
          %s175 = ssub.s32 128, 128
          %176 = vsyncadd %s166, %s175
          %s177 = smul.addr %s173, 128
          %s178 = scalar_lea.hbm %s1, %s177
          %s180 = sshll.u32 %s169, 4
          %s181 = int_to_ptr.vmem [resolvable:$true] %s180
          %183 = dma.hbm_to_vmem [thread:$0]  %s178, 128, %s181, %s166
        $region24: #{tpu_custom_call.1} parent=15 // pred_fallthru
          _
      $region16: #{tpu_custom_call.1} parent=5 // pred_fallthru
        _
      %p184 = scmp.le.s32.totalorder 1, %s15
      %p185 = scmp.lt.s32.totalorder %s15, 3
      %p186 = pnand %p184, %p185
      %p187 = pneg %p186
      // Predicated region
      $region25: #{tpu_custom_call.1} parent=5 // pred_check
        _
      $region26: #{tpu_custom_call.1} parent=5 // pred_check_branch
        %189 = sbr.rel (%p186) target = $region28
      $region27: #{tpu_custom_call.1} parent=5 // pred_region
        %s190 = ssub.s32 %s15, 1
        %s191 = sand.u32 %s48, 1
        %s192 = scalar_lea.sflag [#allocation3], %s191
        %s193 = sand.u32 %s48, 1
        %s194 = smul.addr %s193, 8
        %s195 = scalar_lea.vmem [#allocation2], %s194
        // Predicated region
        $region29: #{tpu_custom_call.1} parent=27 // pred_check
          %p196 = pneg %p61
        $region30: #{tpu_custom_call.1} parent=27 // pred_check_branch
          %198 = sbr.rel (%p196) target = $region32
        $region31: #{tpu_custom_call.1} parent=27 // pred_region
          %199 = dma.done %s192, 128
        $region32: #{tpu_custom_call.1} parent=27 // pred_fallthru
          _
        %s200 = sand.u32 %s82, 1
        %s201 = scalar_lea.sflag [#allocation6], %s200
        %s202 = sand.u32 %s82, 1
        %s203 = smul.addr %s202, 8
        %s204 = scalar_lea.vmem [#allocation5], %s203
        // Predicated region
        $region33: #{tpu_custom_call.1} parent=27 // pred_check
          %p205 = pneg %p95
        $region34: #{tpu_custom_call.1} parent=27 // pred_check_branch
          %207 = sbr.rel (%p205) target = $region36
        $region35: #{tpu_custom_call.1} parent=27 // pred_region
          %208 = dma.done %s201, 128
        $region36: #{tpu_custom_call.1} parent=27 // pred_fallthru
          _
        %s209 = sand.u32 %s48, 1
        %s210 = scalar_lea.sflag [#allocation3], %s209
        %s211 = sand.u32 %s48, 1
        %s212 = smul.addr %s211, 8
        %s213 = scalar_lea.vmem [#allocation2], %s212
        %p214 = pneg %p61
        %p215 = pneg %p58
        %s216 = sand.u32 %s82, 1
        %s217 = scalar_lea.sflag [#allocation6], %s216
        %s218 = sand.u32 %s82, 1
        %s219 = smul.addr %s218, 8
        %s220 = scalar_lea.vmem [#allocation5], %s219
        %p221 = pneg %p95
        %p222 = pneg %p92
        %p223 = pneg %p121
        %p224 = pneg %p118
        %s225 = smul.u32 %s24, 2
        %s226 = sadd.s32 %s225, %s25
        %p227 = scmp.lt.s32.totalorder %s226, 1
        %s228 = scalar_select %p227, %s226, 1
        %s229 = smul.u32 %s24, 2
        %s230 = sadd.s32 %s229, %s25
        %p231 = scmp.lt.s32.totalorder %s230, 1
        %s232 = scalar_select %p231, %s230, 1
        %s233 = smul.u32 2, %s24
        %p234 = scmp.eq.s32.totalorder %s25, 0
        // Predicated region
        $region37: #{tpu_custom_call.1} parent=27 // pred_check
          %p235 = pneg %p234
        $region38: #{tpu_custom_call.1} parent=27 // pred_check_branch
          %237 = sbr.rel (%p235) target = $region40
        $region39: #{tpu_custom_call.1} parent=27 // pred_region
          %238 = vst [vmem:[#allocation7] sm:$0xff] 0.0
          %239 = vst [vmem:[#allocation7 + $0x8] sm:$0xff] 0.0
        $region40: #{tpu_custom_call.1} parent=27 // pred_fallthru
          _
        %v240 = vld [vmem:[%s195] sm:$0xff]
        %v241 = vld [vmem:[%s204] sm:$0xff]
        %v242 = vmul.f32 %v240, %v241
        %v243 = vadd.f32 %v242, 0.0
        %v244 = vadd.f32 %v240, %v241
        %v245 = vadd.f32 %v244, 0.0
        %v246 = vld [vmem:[#allocation7] sm:$0xff]
        %v247 = vadd.f32 %v246, %v243
        %248 = vst [vmem:[#allocation7] sm:$0xff] %v247
        %s249 = scalar_lea.vmem [#allocation7], 8
        %v250 = vld [vmem:[%s249] sm:$0xff]
        %v251 = vadd.f32 %v250, %v245
        %252 = vst [vmem:[%s249] sm:$0xff] %v251
        // Predicated region
        $region41: #{tpu_custom_call.1} parent=27 // pred_check
          %p253 = pneg %p118
        $region42: #{tpu_custom_call.1} parent=27 // pred_check_branch
          %255 = sbr.rel (%p253) target = $region44
        $region43: #{tpu_custom_call.1} parent=27 // pred_region
          %s256 = smul.u32 2, %s24
          %s258 = ssub.s32 256, 256
          %259 = vsyncadd [#allocation4], %s258
          %s260 = smul.addr %s256, 128
          %s261 = scalar_lea.hbm %s2, %s260
          %s262 = sshll.u32 [#allocation7], 4
          %s263 = int_to_ptr.vmem [resolvable:$true] %s262
          %268 = dma.vmem_to_hbm [thread:$0]  %s263, 256, %s261, [#allocation4], 128, 128, 8
        $region44: #{tpu_custom_call.1} parent=27 // pred_fallthru
          _
        // Predicated region
        $region45: #{tpu_custom_call.1} parent=27 // pred_check
          %p269 = pneg %p118
        $region46: #{tpu_custom_call.1} parent=27 // pred_check_branch
          %271 = sbr.rel (%p269) target = $region48
        $region47: #{tpu_custom_call.1} parent=27 // pred_region
          %272 = dma.done [#allocation4], 256
        $region48: #{tpu_custom_call.1} parent=27 // pred_fallthru
          _
      $region28: #{tpu_custom_call.1} parent=5 // pred_fallthru
        _
      %p273 = scmp.le.s32.totalorder 2, %s15
      // Predicated region
      $region49: #{tpu_custom_call.1} parent=5 // pred_check
        %p274 = pneg %p273
      $region50: #{tpu_custom_call.1} parent=5 // pred_check_branch
        %276 = sbr.rel (%p274) target = $region52
      $region51: #{tpu_custom_call.1} parent=5 // pred_region
        %s277 = ssub.s32 %s15, 2
      $region52: #{tpu_custom_call.1} parent=5 // pred_fallthru
        _
    $region6: #{tpu_custom_call.1} parent=1 // loop_footer
      %s19 = sadd.s32 1, %s15
    $region7: #{tpu_custom_call.1} parent=1 // loop_footer_branch
      %14 = sbr.rel target = $region3
    $region8: #{tpu_custom_call.1} parent=1 // loop_exit
      _
    %278 = vsyncpa [#allocation3], 1
    %s279 = scalar_lea.sflag [#allocation3], 1
    %280 = vsyncpa %s279, 1
    %281 = vsyncpa [#allocation6], 1
    %s282 = scalar_lea.sflag [#allocation6], 1
    %283 = vsyncpa %s282, 1
    %284 = vsyncpa [#allocation4], 1
    %s285 = scalar_lea.sflag [#allocation4], 1
    %286 = vsyncpa %s285, 1

</llo_original>
